<compile_context>
chip_gen: v6e
topology: v6e:2x2x1
jax: 0.10.0
libtpu: 0.0.40
codegen_flags: <defaults>
</compile_context>

<pallas_src>
import jax
import jax.numpy as jnp
from jax.experimental import pallas as pl
from jax.experimental.pallas import tpu as pltpu


# -----------------------------------------------------------------------------
# Parameter ("buffer") setup — plain JAX glue, mirrors compute_position_embedding
# -----------------------------------------------------------------------------
def compute_position_embedding(embed_dims, patch_resolution, theta=10000.0):
    half_dim = embed_dims // 2
    h, w = patch_resolution
    frequency = theta ** (jnp.arange(0, half_dim, 2, dtype=jnp.float32) / half_dim)
    frequency = 1.0 / frequency                                        # (half_dim // 2,)
    th = jnp.arange(h, dtype=jnp.float32) / h * half_dim
    tw = jnp.arange(w, dtype=jnp.float32) / w * half_dim
    # torch .repeat(1, 2) == tile (not interleave)
    position_h = jnp.tile(th[:, None] * frequency[None, :], (1, 2))    # (h, half_dim)
    position_w = jnp.tile(tw[:, None] * frequency[None, :], (1, 2))    # (w, half_dim)
    height = jnp.broadcast_to(position_h[:, None, :], (h, w, half_dim))
    width = jnp.broadcast_to(position_w[None, :, :], (h, w, half_dim))
    position = jnp.concatenate((height, width), axis=-1)               # (h, w, embed_dims)
    freqs_cos = jnp.cos(position).reshape(-1, embed_dims)              # (h*w, embed_dims)
    freqs_sin = jnp.sin(position).reshape(-1, embed_dims)
    return freqs_cos, freqs_sin


# -----------------------------------------------------------------------------
# Kernel body:  out = x * cos + select(parity, x[i+1], x[i-1]) * sin_signed
# where sin_signed = -sin on even lanes, +sin on odd lanes, so the result is
# exactly  x*cos + rotate_pairs(x)*sin  of the reference.
# The parity select never picks the wrap-around (or ragged-padding) lane.
# -----------------------------------------------------------------------------
def _rope_kernel(x_ref, cos_ref, sin_ref, o_ref):
    x = x_ref[...].astype(jnp.float32)               # (TB, TC)
    c = x.shape[-1]
    # pltpu.roll needs non-negative shifts.
    left = pltpu.roll(x, shift=c - 1, axis=1)        # left[i]  = x[(i + 1) % c]
    right = pltpu.roll(x, shift=1, axis=1)           # right[i] = x[(i - 1) % c]
    lane = jax.lax.broadcasted_iota(jnp.int32, x.shape, 1)
    rot = jnp.where((lane & 1) == 0, left, right)    # pair-swap (x0,x1)->(x1,x0)
    o = x * cos_ref[...] + rot * sin_ref[...]        # (1,TC) tables broadcast over TB
    o_ref[...] = o.astype(o_ref.dtype)


def _choose_blocks(rows, nd, itemsize, target_bytes=2 << 20, min_blocks=8):
    """Pick (row_block, col_block).  Row block: multiple of the sublane packing
    (8 f32 / 16 bf16) or the full row extent.  Col block: multiple of 128 (so
    always even -> pair/parity integrity across blocks) or the full lane
    extent.  Aim for ~2 MiB blocks but at least `min_blocks` grid steps for
    pipelining / v7x two-TC sharding.  Ragged trailing blocks are fine."""
    sub = max(8, 32 // itemsize)                      # 8 for f32, 16 for bf16
    total = rows * nd * itemsize
    budget = min(target_bytes, max(sub * 128 * itemsize, -(-total // min_blocks)))
    row_bytes = nd * itemsize
    if rows < sub:
        tb = rows                                     # full extent: always legal
    elif budget >= sub * row_bytes:
        tb = max(sub, min((budget // row_bytes) // sub * sub, (rows // sub) * sub))
    else:
        tb = sub
    col_budget = max(1, budget // (tb * itemsize))
    if col_budget >= nd:
        tc = nd
    else:
        tc = min(nd, max(128, (col_budget // 128) * 128))
    return tb, tc


def rotary_embedding_fast(x, freqs_cos, freqs_sin, *, block_rows=None,
                          block_cols=None, donate_input=False):
    """x: (B, H, N, D); freqs_*: (N, D).  Matches RotaryEmbeddingFast.forward."""
    B, H, N, D = x.shape
    assert D % 2 == 0, "head dim must be even for paired RoPE rotation"
    rows, nd = B * H, N * D

    # Lane-dense flatten (contiguous merges; free).
    xf = x.reshape(rows, nd)
    cos_flat = freqs_cos.astype(jnp.float32).reshape(1, nd)
    sin_flat = freqs_sin.astype(jnp.float32).reshape(1, nd)
    even = (jnp.arange(nd) % 2 == 0)[None, :]
    sin_signed = jnp.where(even, -sin_flat, sin_flat)     # sign baked in, one table

    itemsize = jnp.dtype(x.dtype).itemsize
    tb, tc = _choose_blocks(rows, nd, itemsize)
    if block_rows is not None:
        tb = block_rows
    if block_cols is not None:
        tc = block_cols
    # Pair / parity integrity across column blocks needs an even column block.
    assert tc == nd or tc % 2 == 0
    grid = (pl.cdiv(rows, tb), pl.cdiv(nd, tc))

    # VMEM budget: x + out double-buffered, 2 f32 tables double-buffered, slack.
    block_bytes = tb * tc * itemsize
    vmem_need = 4 * block_bytes + 4 * tc * 4 + (2 << 20)
    vmem_limit = int(min(64 << 20, max(vmem_need, 16 << 20)))

    extra = {"input_output_aliases": {0: 0}} if donate_input else {}

    out = pl.pallas_call(
        _rope_kernel,
        out_shape=jax.ShapeDtypeStruct((rows, nd), x.dtype),
        grid_spec=pltpu.PrefetchScalarGridSpec(
            num_scalar_prefetch=0,
            grid=grid,
            in_specs=[
                pl.BlockSpec((tb, tc), lambda i, j: (i, j)),   # x (pipelined)
                pl.BlockSpec((1, tc), lambda i, j: (0, j)),    # cos
                pl.BlockSpec((1, tc), lambda i, j: (0, j)),    # signed sin
            ],
            out_specs=pl.BlockSpec((tb, tc), lambda i, j: (i, j)),
        ),
        compiler_params=pltpu.CompilerParams(
            dimension_semantics=("parallel", "parallel"),
            vmem_limit_bytes=vmem_limit),
        **extra,
    )(xf, cos_flat, sin_signed)

    return out.reshape(B, H, N, D)


# -----------------------------------------------------------------------------
# Pure-JAX reference (mirrors the PyTorch forward exactly) for verification.
# -----------------------------------------------------------------------------
def rotary_embedding_ref(x, freqs_cos, freqs_sin):
    B, H, N, D = x.shape
    xr = x.reshape(B, H, N, D // 2, 2)
    x1 = xr[..., 0]
    x2 = xr[..., 1]
    rot = jnp.stack((-x2, x1), axis=-1).reshape(B, H, N, D)
    return x * freqs_cos + rot * freqs_sin


if __name__ == "__main__":
    def run_case(batch, heads, patch_resolution, embed_dims, dtype, key):
        h, w = patch_resolution
        n = h * w
        fc, fs = compute_position_embedding(embed_dims, patch_resolution, theta=10000.0)
        x32 = jax.random.normal(key, (batch, heads, n, embed_dims), dtype=jnp.float32)
        x = x32.astype(dtype)
        out = rotary_embedding_fast(x, fc, fs)
        out = jax.block_until_ready(out)
        ref = rotary_embedding_ref(x.astype(jnp.float32), fc, fs)
        assert out.shape == x.shape and out.dtype == x.dtype
        tol = 1e-5 if dtype == jnp.float32 else 3e-2
        assert jnp.allclose(out.astype(jnp.float32), ref, atol=tol, rtol=tol), \
            f"mismatch vs reference for {dtype}, {patch_resolution}"

    key = jax.random.PRNGKey(0)
    k1, k2, k3 = jax.random.split(key, 3)
    # Main shape consistent with the module (per-head dim 32, 8x8 patches).
    run_case(2, 4, (8, 8), 32, jnp.float32, k1)
    # Awkward shape: B*H < 8 rows and N*D not a multiple of the column block
    # -> exercises ragged row/lane blocks handled via pl.cdiv + masked stores.
    run_case(1, 3, (7, 9), 32, jnp.float32, k2)
    # bf16 path: half the HBM traffic, arithmetic still in f32.
    run_case(2, 4, (8, 8), 32, jnp.bfloat16, k3)

    print("KERNEL_OK")
</pallas_src>

<mosaic_0001>
module attributes {stable_mosaic.version = 11 : i64} {
  func.func @_rope_kernel(%arg0: i32, %arg1: i32, %arg2: memref<8x256xf32, #tpu.memory_space<vmem>>, %arg3: memref<1x256xf32, #tpu.memory_space<vmem>>, %arg4: memref<1x256xf32, #tpu.memory_space<vmem>>, %arg5: memref<8x256xf32, #tpu.memory_space<vmem>>) attributes {dimension_semantics = [#tpu.dimension_semantics<parallel>, #tpu.dimension_semantics<parallel>], iteration_bounds = array<i64: 1, 8>, scalar_prefetch = 0 : i64, scratch_operands = 0 : i64, tpu.core_type = #tpu.core_type<tc>, window_params = [{transform_indices = @transform_0, window_bounds = array<i64: 8, 256>}, {transform_indices = @transform_1, window_bounds = array<i64: 1, 256>}, {transform_indices = @transform_2, window_bounds = array<i64: 1, 256>}, {transform_indices = @transform_3, window_bounds = array<i64: 8, 256>}]} {
    %c0 = arith.constant 0 : index
    %c0_0 = arith.constant 0 : index
    %0 = vector.load %arg2[%c0, %c0_0] : memref<8x256xf32, #tpu.memory_space<vmem>>, vector<8x256xf32>
    %c255_i32 = arith.constant 255 : i32
    %1 = tpu.dynamic_rotate %0 by %c255_i32 dim 1 : vector<8x256xf32>, i32 -> vector<8x256xf32>
    %c1_i32 = arith.constant 1 : i32
    %2 = tpu.dynamic_rotate %0 by %c1_i32 dim 1 : vector<8x256xf32>, i32 -> vector<8x256xf32>
    %3 = tpu.iota {dimensions = array<i32: 1>} : vector<8x256xi32>
    %c1_i32_1 = arith.constant 1 : i32
    %4 = vector.broadcast %c1_i32_1 : i32 to vector<8x256xi32>
    %5 = arith.andi %3, %4 : vector<8x256xi32>
    %c0_i32 = arith.constant 0 : i32
    %6 = vector.broadcast %c0_i32 : i32 to vector<8x256xi32>
    %7 = arith.cmpi eq, %5, %6 : vector<8x256xi32>
    %8 = arith.select %7, %1, %2 : vector<8x256xi1>, vector<8x256xf32>
    %c0_2 = arith.constant 0 : index
    %c0_3 = arith.constant 0 : index
    %9 = vector.load %arg3[%c0_2, %c0_3] : memref<1x256xf32, #tpu.memory_space<vmem>>, vector<1x256xf32>
    %10 = vector.broadcast %9 : vector<1x256xf32> to vector<8x256xf32>
    %11 = arith.mulf %0, %10 : vector<8x256xf32>
    %c0_4 = arith.constant 0 : index
    %c0_5 = arith.constant 0 : index
    %12 = vector.load %arg4[%c0_4, %c0_5] : memref<1x256xf32, #tpu.memory_space<vmem>>, vector<1x256xf32>
    %13 = vector.broadcast %12 : vector<1x256xf32> to vector<8x256xf32>
    %14 = arith.mulf %8, %13 : vector<8x256xf32>
    %15 = arith.addf %11, %14 : vector<8x256xf32>
    %c0_6 = arith.constant 0 : index
    %c0_7 = arith.constant 0 : index
    %16 = vector.load %arg5[%c0_6, %c0_7] : memref<8x256xf32, #tpu.memory_space<vmem>>, vector<8x256xf32>
    tpu.vector_store %arg5[%c0_6, %c0_7], %15 {strides = array<i32>} : memref<8x256xf32, #tpu.memory_space<vmem>>, vector<8x256xf32>,
    return
  }
  func.func @transform_0(%arg0: i32, %arg1: i32) -> (i32, i32) {
    %c0_i32 = arith.constant 0 : i32
    return %arg0, %arg1 : i32, i32
  }
  func.func @transform_1(%arg0: i32, %arg1: i32) -> (i32, i32) {
    %c0_i32 = arith.constant 0 : i32
    %c0_i32_0 = arith.constant 0 : i32
    return %c0_i32, %arg1 : i32, i32
  }
  func.func @transform_2(%arg0: i32, %arg1: i32) -> (i32, i32) {
    %c0_i32 = arith.constant 0 : i32
    %c0_i32_0 = arith.constant 0 : i32
    return %c0_i32, %arg1 : i32, i32
  }
  func.func @transform_3(%arg0: i32, %arg1: i32) -> (i32, i32) {
    %c0_i32 = arith.constant 0 : i32
    return %arg0, %arg1 : i32, i32
  }
}

</mosaic_0001>

<llo_original>
// kernel: tpu_custom_call.1
$region0: #{tpu_custom_call.1}
  #allocation0 [shape = 'u32[]', space=smem, size = 0x4, offset = 0x4, fixed_abs, tag = 'smem constant byte address 0x4 - core index']
  #allocation1 [shape = 'u32[144,128]{1,0:T(1,128)}', space=vmem, size = 0x12000, scoped, tag = 'internal scratch']
  %s0 = inlined_call_operand.hbm [shape: f32[8,2048], index: 0, kind: input, shape index: {}]
  %s1 = inlined_call_operand.hbm [shape: f32[1,2048], index: 1, kind: input, shape index: {}]
  %s2 = inlined_call_operand.hbm [shape: f32[1,2048], index: 2, kind: input, shape index: {}]
  %s3 = inlined_call_operand.hbm [shape: f32[8,2048], index: 3, kind: output, shape index: {}]
  %s4 = sld [smem:[#allocation0]]
  $region57: #{tpu_custom_call.1} parent=0
    _
  %s6 = ssub.s32 1, %s4
  %s7 = scalar_select 0, %s6, %s4
  $region1: #{tpu_custom_call.1} parent=0
    #allocation2 [shape = 'u8[16384]{0}', space=vmem, size = 0x4000, scoped, tag = 'input window, operand 0']
    #allocation3 [shape = 's32[2]{0}', space=sflag, size = 0x8, scoped, tag = 'scoped memory for tpu_custom_call.1']
    #allocation4 [shape = 's32[2]{0}', space=sflag, size = 0x8, scoped, tag = 'scoped memory for tpu_custom_call.1']
    #allocation5 [shape = 'u8[2048]{0}', space=vmem, size = 0x800, scoped, tag = 'input window, operand 1']
    #allocation6 [shape = 's32[2]{0}', space=sflag, size = 0x8, scoped, tag = 'scoped memory for tpu_custom_call.1']
    #allocation7 [shape = 'u8[2048]{0}', space=vmem, size = 0x800, scoped, tag = 'input window, operand 2']
    #allocation8 [shape = 'u8[16384]{0}', space=vmem, size = 0x4000, scoped, tag = 'output window, operand 0']
    %8 = vsyncpa [#allocation3], 0
    %s9 = scalar_lea.sflag [#allocation3], 1
    %10 = vsyncpa %s9, 0
    %11 = vsyncpa [#allocation6], 0
    %s12 = scalar_lea.sflag [#allocation6], 1
    %13 = vsyncpa %s12, 0
    %14 = vsyncpa [#allocation4], 0
    %s15 = scalar_lea.sflag [#allocation4], 1
    %16 = vsyncpa %s15, 0
    loop: start=0, step=1, limit=10
    $region2: #{tpu_custom_call.1} parent=1 // loop_pre_header
      _
    $region3: #{tpu_custom_call.1} parent=1 // loop_header
      %s18 = sphi 0, %s22
      %p19 = scmp.ge.s32.totalorder %s18, 10
      %s25 = sphi 0, %s37
      %s26 = sphi 0, %s33
      %s27 = sphi 0, %s25
      %s28 = sphi 0, %s26
      %s29 = sphi 0, %s27
      %s30 = sphi 0, %s28
      %s42 = sphi 0, %s44
      %s45 = sphi 0, %s42
      %s46 = sphi 0, %s45
      %s62 = sphi 0, %s46
      %s68 = sphi 0, %s70
      %s71 = sphi 0, %s68
      %s72 = sphi 0, %s71
      %s88 = sphi 0, %s72
      %s94 = sphi 0, %s96
      %s97 = sphi 0, %s94
      %s98 = sphi 0, %s97
      %s114 = sphi 0, %s98
      %s122 = sphi 0, %s124
      %s125 = sphi 0, %s122
      %s126 = sphi 0, %s125
      %s142 = sphi 0, %s126
    $region4: #{tpu_custom_call.1} parent=1 // loop_header_branch
      %21 = sbr.rel (%p19) target = $region8
    $region5: #{tpu_custom_call.1} parent=1 // loop_body
      %s23 = ssub.s32 %s18, 1
      %s24 = ssub.s32 %s18, 2
      %s31 = sadd.s32 1, %s26
      %p32 = scmp.ge.s32.totalorder %s31, 8
      %s33 = scalar_select %p32, 0, %s31
      %s34 = sadd.s32 1, %s25
      %s35 = scalar_select %p32, %s34, %s25
      %p36 = scmp.ge.s32.totalorder %s35, 1
      %s37 = scalar_select %p36, 0, %s35
      %s38 = ssub.s32 %s25, %s37
      %s39 = ssub.s32 %s26, %s33
      %s40 = sor.u32 %s38, %s39
      %p41 = scmp.eq.s32.totalorder %s40, 0
      %s43 = sadd.s32 %s42, 1
      %s44 = scalar_select %p41, %s42, %s43
      %p47 = pneg %p41
      %p48 = scmp.eq.s32.totalorder %s18, 7
      %p49 = por %p47, %p48
      %p50 = scmp.ne.s32.totalorder %s42, %s45
      %p51 = scmp.eq.s32.totalorder %s18, 0
      %p52 = por %p50, %p51
      %p53 = scmp.ne.s32.totalorder %s42, %s45
      %p54 = scmp.eq.s32.totalorder %s23, 7
      %p55 = por %p53, %p54
      %p56 = scmp.ne.s32.totalorder %s45, %s46
      %p57 = scmp.eq.s32.totalorder %s23, 0
      %p58 = por %p56, %p57
      %p59 = scmp.ne.s32.totalorder %s45, %s46
      %p60 = scmp.eq.s32.totalorder %s24, 7
      %p61 = por %p59, %p60
      %p63 = scmp.ne.s32.totalorder %s46, %s62
      %p64 = scmp.eq.s32.totalorder %s24, 0
      %p65 = por %p63, %p64
      %s66 = ssub.s32 %s26, %s33
      %p67 = scmp.eq.s32.totalorder %s66, 0
      %s69 = sadd.s32 %s68, 1
      %s70 = scalar_select %p67, %s68, %s69
      %p73 = pneg %p67
      %p74 = scmp.eq.s32.totalorder %s18, 7
      %p75 = por %p73, %p74
      %p76 = scmp.ne.s32.totalorder %s68, %s71
      %p77 = scmp.eq.s32.totalorder %s18, 0
      %p78 = por %p76, %p77
      %p79 = scmp.ne.s32.totalorder %s68, %s71
      %p80 = scmp.eq.s32.totalorder %s23, 7
      %p81 = por %p79, %p80
      %p82 = scmp.ne.s32.totalorder %s71, %s72
      %p83 = scmp.eq.s32.totalorder %s23, 0
      %p84 = por %p82, %p83
      %p85 = scmp.ne.s32.totalorder %s71, %s72
      %p86 = scmp.eq.s32.totalorder %s24, 7
      %p87 = por %p85, %p86
      %p89 = scmp.ne.s32.totalorder %s72, %s88
      %p90 = scmp.eq.s32.totalorder %s24, 0
      %p91 = por %p89, %p90
      %s92 = ssub.s32 %s26, %s33
      %p93 = scmp.eq.s32.totalorder %s92, 0
      %s95 = sadd.s32 %s94, 1
      %s96 = scalar_select %p93, %s94, %s95
      %p99 = pneg %p93
      %p100 = scmp.eq.s32.totalorder %s18, 7
      %p101 = por %p99, %p100
      %p102 = scmp.ne.s32.totalorder %s94, %s97
      %p103 = scmp.eq.s32.totalorder %s18, 0
      %p104 = por %p102, %p103
      %p105 = scmp.ne.s32.totalorder %s94, %s97
      %p106 = scmp.eq.s32.totalorder %s23, 7
      %p107 = por %p105, %p106
      %p108 = scmp.ne.s32.totalorder %s97, %s98
      %p109 = scmp.eq.s32.totalorder %s23, 0
      %p110 = por %p108, %p109
      %p111 = scmp.ne.s32.totalorder %s97, %s98
      %p112 = scmp.eq.s32.totalorder %s24, 7
      %p113 = por %p111, %p112
      %p115 = scmp.ne.s32.totalorder %s98, %s114
      %p116 = scmp.eq.s32.totalorder %s24, 0
      %p117 = por %p115, %p116
      %s118 = ssub.s32 %s25, %s37
      %s119 = ssub.s32 %s26, %s33
      %s120 = sor.u32 %s118, %s119
      %p121 = scmp.eq.s32.totalorder %s120, 0
      %s123 = sadd.s32 %s122, 1
      %s124 = scalar_select %p121, %s122, %s123
      %p127 = pneg %p121
      %p128 = scmp.eq.s32.totalorder %s18, 7
      %p129 = por %p127, %p128
      %p130 = scmp.ne.s32.totalorder %s122, %s125
      %p131 = scmp.eq.s32.totalorder %s18, 0
      %p132 = por %p130, %p131
      %p133 = scmp.ne.s32.totalorder %s122, %s125
      %p134 = scmp.eq.s32.totalorder %s23, 7
      %p135 = por %p133, %p134
      %p136 = scmp.ne.s32.totalorder %s125, %s126
      %p137 = scmp.eq.s32.totalorder %s23, 0
      %p138 = por %p136, %p137
      %p139 = scmp.ne.s32.totalorder %s125, %s126
      %p140 = scmp.eq.s32.totalorder %s24, 7
      %p141 = por %p139, %p140
      %p143 = scmp.ne.s32.totalorder %s126, %s142
      %p144 = scmp.eq.s32.totalorder %s24, 0
      %p145 = por %p143, %p144
      %p146 = scmp.le.s32.totalorder 1, %s18
      %p147 = scmp.lt.s32.totalorder %s18, 9
      %p148 = pnand %p146, %p147
      %p149 = pneg %p148
      // Predicated region
      $region9: #{tpu_custom_call.1} parent=5 // pred_check
        _
      $region10: #{tpu_custom_call.1} parent=5 // pred_check_branch
        %151 = sbr.rel (%p148) target = $region12
      $region11: #{tpu_custom_call.1} parent=5 // pred_region
        %s152 = ssub.s32 %s18, 1
      $region12: #{tpu_custom_call.1} parent=5 // pred_fallthru
        _
      %p153 = scmp.lt.s32.totalorder %s18, 8
      // Predicated region
      $region13: #{tpu_custom_call.1} parent=5 // pred_check
        %p154 = pneg %p153
      $region14: #{tpu_custom_call.1} parent=5 // pred_check_branch
        %156 = sbr.rel (%p154) target = $region16
      $region15: #{tpu_custom_call.1} parent=5 // pred_region
        // Predicated region
        $region17: #{tpu_custom_call.1} parent=15 // pred_check
          %p157 = pneg %p52
        $region18: #{tpu_custom_call.1} parent=15 // pred_check_branch
          %159 = sbr.rel (%p157) target = $region20
        $region19: #{tpu_custom_call.1} parent=15 // pred_region
          %s160 = sand.u32 %s42, 1
          %s161 = scalar_lea.sflag [#allocation3], %s160
          %s162 = sand.u32 %s42, 1
          %s163 = smul.addr %s162, 16
          %s164 = scalar_lea.vmem [#allocation2], %s163
          %s165 = smul.u32 2, %s26
          %s167 = ssub.s32 256, 256
          %168 = vsyncadd %s161, %s167
          %s169 = smul.addr %s25, 16
          %s170 = sadd.s32 %s165, %s169
          %s171 = smul.addr %s170, 128
          %s172 = scalar_lea.hbm %s0, %s171
          %s174 = sshll.u32 %s164, 4
          %s175 = int_to_ptr.vmem [resolvable:$true] %s174
          %177 = dma.hbm_to_vmem [thread:$0]  %s172, 256, %s175, %s161
        $region20: #{tpu_custom_call.1} parent=15 // pred_fallthru
          _
        // Predicated region
        $region21: #{tpu_custom_call.1} parent=15 // pred_check
          %p178 = pneg %p78
        $region22: #{tpu_custom_call.1} parent=15 // pred_check_branch
          %180 = sbr.rel (%p178) target = $region24
        $region23: #{tpu_custom_call.1} parent=15 // pred_region
          %s181 = sand.u32 %s18, 1
          %s182 = scalar_lea.sflag [#allocation6], %s181
          %s183 = sand.u32 %s68, 1
          %s184 = smul.addr %s183, 2
          %s185 = scalar_lea.vmem [#allocation5], %s184
          %s186 = smul.u32 2, %s26
          %s188 = ssub.s32 32, 32
          %189 = vsyncadd %s182, %s188
          %s190 = smul.addr %s186, 16
          %s191 = scalar_lea.hbm %s1, %s190
          %s193 = sshll.u32 %s185, 4
          %s194 = int_to_ptr.vmem [resolvable:$true] %s193
          %196 = dma.hbm_to_vmem [thread:$0]  %s191, 32, %s194, %s182
        $region24: #{tpu_custom_call.1} parent=15 // pred_fallthru
          _
        // Predicated region
        $region25: #{tpu_custom_call.1} parent=15 // pred_check
          %p197 = pneg %p104
        $region26: #{tpu_custom_call.1} parent=15 // pred_check_branch
          %199 = sbr.rel (%p197) target = $region28
        $region27: #{tpu_custom_call.1} parent=15 // pred_region
          %s200 = sand.u32 %s18, 1
          %s201 = scalar_lea.sflag [#allocation6], %s200
          %s202 = sand.u32 %s94, 1
          %s203 = smul.addr %s202, 2
          %s204 = scalar_lea.vmem [#allocation7], %s203
          %s205 = smul.u32 2, %s26
          %s207 = ssub.s32 32, 32
          %208 = vsyncadd %s201, %s207
          %s209 = smul.addr %s205, 16
          %s210 = scalar_lea.hbm %s2, %s209
          %s212 = sshll.u32 %s204, 4
          %s213 = int_to_ptr.vmem [resolvable:$true] %s212
          %215 = dma.hbm_to_vmem [thread:$0]  %s210, 32, %s213, %s201
        $region28: #{tpu_custom_call.1} parent=15 // pred_fallthru
          _
      $region16: #{tpu_custom_call.1} parent=5 // pred_fallthru
        _
      %p216 = scmp.le.s32.totalorder 1, %s18
      %p217 = scmp.lt.s32.totalorder %s18, 9
      %p218 = pnand %p216, %p217
      %p219 = pneg %p218
      // Predicated region
      $region29: #{tpu_custom_call.1} parent=5 // pred_check
        _
      $region30: #{tpu_custom_call.1} parent=5 // pred_check_branch
        %221 = sbr.rel (%p218) target = $region32
      $region31: #{tpu_custom_call.1} parent=5 // pred_region
        %s222 = ssub.s32 %s18, 1
        %s223 = sand.u32 %s45, 1
        %s224 = scalar_lea.sflag [#allocation3], %s223
        %s225 = sand.u32 %s45, 1
        %s226 = smul.addr %s225, 16
        %s227 = scalar_lea.vmem [#allocation2], %s226
        // Predicated region
        $region33: #{tpu_custom_call.1} parent=31 // pred_check
          %p228 = pneg %p58
        $region34: #{tpu_custom_call.1} parent=31 // pred_check_branch
          %230 = sbr.rel (%p228) target = $region36
        $region35: #{tpu_custom_call.1} parent=31 // pred_region
          %231 = dma.done %s224, 256
        $region36: #{tpu_custom_call.1} parent=31 // pred_fallthru
          _
        %s232 = sand.u32 %s23, 1
        %s233 = scalar_lea.sflag [#allocation6], %s232
        %s234 = sand.u32 %s71, 1
        %s235 = smul.addr %s234, 2
        %s236 = scalar_lea.vmem [#allocation5], %s235
        // Predicated region
        $region37: #{tpu_custom_call.1} parent=31 // pred_check
          %p237 = pneg %p84
        $region38: #{tpu_custom_call.1} parent=31 // pred_check_branch
          %239 = sbr.rel (%p237) target = $region40
        $region39: #{tpu_custom_call.1} parent=31 // pred_region
          %240 = dma.done %s233, 32
        $region40: #{tpu_custom_call.1} parent=31 // pred_fallthru
          _
        %s241 = sand.u32 %s23, 1
        %s242 = scalar_lea.sflag [#allocation6], %s241
        %s243 = sand.u32 %s97, 1
        %s244 = smul.addr %s243, 2
        %s245 = scalar_lea.vmem [#allocation7], %s244
        // Predicated region
        $region41: #{tpu_custom_call.1} parent=31 // pred_check
          %p246 = pneg %p110
        $region42: #{tpu_custom_call.1} parent=31 // pred_check_branch
          %248 = sbr.rel (%p246) target = $region44
        $region43: #{tpu_custom_call.1} parent=31 // pred_region
          %249 = dma.done %s242, 32
        $region44: #{tpu_custom_call.1} parent=31 // pred_fallthru
          _
        %s250 = sand.u32 %s45, 1
        %s251 = scalar_lea.sflag [#allocation3], %s250
        %s252 = sand.u32 %s45, 1
        %s253 = smul.addr %s252, 16
        %s254 = scalar_lea.vmem [#allocation2], %s253
        %p255 = pneg %p58
        %p256 = pneg %p55
        %s257 = sand.u32 %s23, 1
        %s258 = scalar_lea.sflag [#allocation6], %s257
        %s259 = sand.u32 %s71, 1
        %s260 = smul.addr %s259, 2
        %s261 = scalar_lea.vmem [#allocation5], %s260
        %p262 = pneg %p84
        %p263 = pneg %p81
        %s264 = sand.u32 %s23, 1
        %s265 = scalar_lea.sflag [#allocation6], %s264
        %s266 = sand.u32 %s97, 1
        %s267 = smul.addr %s266, 2
        %s268 = scalar_lea.vmem [#allocation7], %s267
        %p269 = pneg %p110
        %p270 = pneg %p107
        %p271 = pneg %p138
        %p272 = pneg %p135
        %s273 = sand.u32 %s125, 1
        %s274 = scalar_lea.sflag [#allocation4], %s273
        %s275 = sand.u32 %s125, 1
        %s276 = smul.addr %s275, 16
        %s277 = scalar_lea.vmem [#allocation8], %s276
        %s278 = smul.u32 2, %s28
        %s279 = smul.u32 2, %s28
        %s280 = smul.u32 2, %s28
        %s281 = smul.u32 2, %s28
        %v282 = vld [vmem:[%s227] sm:$0xff]
        %v283 = vld [vmem:[%s227 + $0x8] sm:$0xff]
        %284 = vrot.lane.b32.xlu0 %v282, 127
        %v285 = vpop.permute.xlu0 %284
        %286 = vrot.lane.b32.xlu0 %v283, 127
        %v287 = vpop.permute.xlu0 %286
        %v288 = vlaneseq
        %v289 = vand.u32 %v288, 127
        %vm290 = vcmp.lt.s32.totalorder %v289, 127
        %v291 = vsel %vm290, %v285, %v287
        %v292 = vsel %vm290, %v287, %v285
        %293 = vrot.lane.b32.xlu0 %v282, 1
        %v294 = vpop.permute.xlu0 %293
        %295 = vrot.lane.b32.xlu0 %v283, 1
        %v296 = vpop.permute.xlu0 %295
        %vm297 = vcmp.lt.s32.totalorder %v289, 1
        %v298 = vsel %vm297, %v294, %v296
        %v299 = vsel %vm297, %v296, %v294
        %v300 = vadd.s32 %v289, 128
        %v301 = vand.u32 %v289, 1
        %v302 = vand.u32 %v300, 1
        %vm303 = vcmp.eq.s32.totalorder %v301, 0
        %vm304 = vcmp.eq.s32.totalorder %v302, 0
        %v305 = vsel %vm303, %v291, %v299
        %v306 = vsel %vm304, %v292, %v298
        %v307 = vld [vmem:[%s236] sm:$0x3]
        %v309 = vlaneseq
        %v310 = vshrl.u32 %v309, 7
        %v311 = vsub.s32 0, %v310
        %v312 = vrot.slane %v307, %v311
        %v313 = vlaneseq
        %v314 = vshrl.u32 %v313, 7
        %v315 = vsub.s32 1, %v314
        %v316 = vrot.slane %v307, %v315
        %v319 = vmul.f32 %v282, %v312
        %v320 = vmul.f32 %v283, %v316
        %v321 = vld [vmem:[%s245] sm:$0x3]
        %v323 = vlaneseq
        %v324 = vshrl.u32 %v323, 7
        %v325 = vsub.s32 0, %v324
        %v326 = vrot.slane %v321, %v325
        %v327 = vlaneseq
        %v328 = vshrl.u32 %v327, 7
        %v329 = vsub.s32 1, %v328
        %v330 = vrot.slane %v321, %v329
        %v333 = vmul.f32 %v305, %v326
        %v334 = vmul.f32 %v306, %v330
        %v335 = vadd.f32 %v319, %v333
        %v336 = vadd.f32 %v320, %v334
        %337 = vst [vmem:[%s277] sm:$0xff] %v335
        %338 = vst [vmem:[%s277 + $0x8] sm:$0xff] %v336
        %s339 = sand.u32 %s125, 1
        %s340 = scalar_lea.sflag [#allocation4], %s339
        %s341 = sand.u32 %s125, 1
        %s342 = smul.addr %s341, 16
        %s343 = scalar_lea.vmem [#allocation8], %s342
        // Predicated region
        $region45: #{tpu_custom_call.1} parent=31 // pred_check
          %p344 = pneg %p135
        $region46: #{tpu_custom_call.1} parent=31 // pred_check_branch
          %346 = sbr.rel (%p344) target = $region48
        $region47: #{tpu_custom_call.1} parent=31 // pred_region
          %s347 = smul.u32 2, %s28
          %s349 = ssub.s32 256, 256
          %350 = vsyncadd %s340, %s349
          %s351 = smul.addr %s27, 16
          %s352 = sadd.s32 %s347, %s351
          %s353 = smul.addr %s352, 128
          %s354 = scalar_lea.hbm %s3, %s353
          %s356 = sshll.u32 %s343, 4
          %s357 = int_to_ptr.vmem [resolvable:$true] %s356
          %359 = dma.vmem_to_hbm [thread:$0]  %s357, 256, %s354, %s340
        $region48: #{tpu_custom_call.1} parent=31 // pred_fallthru
          _
      $region32: #{tpu_custom_call.1} parent=5 // pred_fallthru
        _
      %p360 = scmp.le.s32.totalorder 2, %s18
      // Predicated region
      $region49: #{tpu_custom_call.1} parent=5 // pred_check
        %p361 = pneg %p360
      $region50: #{tpu_custom_call.1} parent=5 // pred_check_branch
        %363 = sbr.rel (%p361) target = $region52
      $region51: #{tpu_custom_call.1} parent=5 // pred_region
        %s364 = ssub.s32 %s18, 2
        // Predicated region
        $region53: #{tpu_custom_call.1} parent=51 // pred_check
          %p365 = pneg %p141
        $region54: #{tpu_custom_call.1} parent=51 // pred_check_branch
          %367 = sbr.rel (%p365) target = $region56
        $region55: #{tpu_custom_call.1} parent=51 // pred_region
          %s368 = sand.u32 %s126, 1
          %s369 = scalar_lea.sflag [#allocation4], %s368
          %s370 = sand.u32 %s126, 1
          %s371 = smul.addr %s370, 16
          %s372 = scalar_lea.vmem [#allocation8], %s371
          %373 = dma.done %s369, 256
        $region56: #{tpu_custom_call.1} parent=51 // pred_fallthru
          _
      $region52: #{tpu_custom_call.1} parent=5 // pred_fallthru
        _
    $region6: #{tpu_custom_call.1} parent=1 // loop_footer
      %s22 = sadd.s32 1, %s18
    $region7: #{tpu_custom_call.1} parent=1 // loop_footer_branch
      %17 = sbr.rel target = $region3
    $region8: #{tpu_custom_call.1} parent=1 // loop_exit
      _
    %374 = vsyncpa [#allocation3], 1
    %s375 = scalar_lea.sflag [#allocation3], 1
    %376 = vsyncpa %s375, 1
    %377 = vsyncpa [#allocation6], 1
    %s378 = scalar_lea.sflag [#allocation6], 1
    %379 = vsyncpa %s378, 1
    %380 = vsyncpa [#allocation4], 1
    %s381 = scalar_lea.sflag [#allocation4], 1
    %382 = vsyncpa %s381, 1

</llo_original>
